<compile_context>
chip_gen: v5e
topology: v5e:2x2
jax: 0.10.0
libtpu: 0.0.40
codegen_flags: <defaults>
</compile_context>

<pallas_src>
import functools

import jax
import jax.numpy as jnp
import numpy as np
from jax import lax
from jax.experimental import pallas as pl
from jax.experimental.pallas import tpu as pltpu


def _sor2d_kernel(omega_ref, f_ref, u0_ref, u_out_ref, u_scr, *, h, num_iter, height):
    W, L = f_ref.shape                      # L = lane_batch * height
    H = height

    omega = omega_ref[0]                    # scalar parameter (SMEM)
    w4 = omega * jnp.float32(0.25)          # folded 0.25 * omega
    zero = jnp.float32(0.0)

    f = f_ref[...]                          # (W, L)
    u = u0_ref[...]                         # (W, L)
    ofh = (omega * jnp.float32(h * h / 4.0)) * f    # omega * h^2/4 * f, hoisted

    rows = lax.broadcasted_iota(jnp.int32, (W, L), 0)
    col_pat = lax.broadcasted_iota(jnp.int32, (W, H), 1)
    cols = jnp.tile(col_pat, (1, L // H))   # within-field column index per lane

    # Masks reproducing the PyTorch strided slices (W, H even):
    odd_r = ((rows & 1) == 1) & (rows < W - 1)        # rows 1:-1:2
    even_r = ((rows & 1) == 0) & (rows >= 2)          # rows 2::2
    odd_c = ((cols & 1) == 1) & (cols < H - 1)        # cols 1:-1:2
    even_c = ((cols & 1) == 0) & (cols >= 2)          # cols 2::2
    color_masks = (odd_r & odd_c, odd_r & even_c, even_r & odd_c, even_r & even_c)

    # Loop-invariant boundary masks (hoisted; rows/cols die here).
    last_col = cols == H - 1
    first_col = cols == 0
    row0 = rows == 0
    row_last = rows == W - 1

    # Zero the halo rows once so shifted loads never see garbage (the halo
    # rows are only ever read at masked-away positions anyway).
    u_scr[pl.ds(0, 1), :] = jnp.zeros((1, L), jnp.float32)
    u_scr[pl.ds(W + 1, 1), :] = jnp.zeros((1, L), jnp.float32)

    def one_iter(_, v):
        # Four sequential color sweeps (each sees the previous sweeps' writes).
        for m in color_masks:
            u_scr[pl.ds(1, W), :] = v                   # field rows at scratch rows 1..W
            up = u_scr[pl.ds(0, W), :]                  # up[r]   = v[r-1] (row 0: halo, masked)
            down = u_scr[pl.ds(2, W), :]                # down[r] = v[r+1] (row W-1: halo, masked)
            left = pltpu.roll(v, shift=1, axis=1)       # left[c]  = v[c-1]
            right = pltpu.roll(v, shift=L - 1, axis=1)  # right[c] = v[c+1]
            delta = w4 * (up + down + left + right) - omega * v - ofh
            v = v + jnp.where(m, delta, zero)

        # Boundary updates.  Equivalent to torch's sequential order
        # (zero last col; row0<-row1; col0<-col1; rowW-1<-rowW-2) for W,H >= 4:
        # both row copies read the post-DB field, and the col0<-col1 copy is
        # applied last to every row (including the two freshly copied rows).
        v = jnp.where(last_col, zero, v)                # update_DB: u[..., -1] = 0
        row1 = v[1:2, :]                                # field row 1   (post-DB)
        rowm2 = v[W - 2:W - 1, :]                       # field row W-2 (post-DB)
        v = jnp.where(row0, row1, v)                    # row 0   <- row 1
        v = jnp.where(row_last, rowm2, v)               # row W-1 <- row W-2
        v = jnp.where(first_col, pltpu.roll(v, shift=L - 1, axis=1), v)  # col 0 <- col 1
        return v

    u_out_ref[...] = lax.fori_loop(0, num_iter, one_iter, u)


def _choose_lane_batch(B, W, H):
    """How many batch elements to fold into the lane (last) dim."""
    # Keep ~32 live (W, L) f32 slabs under ~44 MiB so a block fits v7x's 64 MiB
    # VMEM with headroom; target a few hundred lanes for dense vregs/stores.
    max_lanes = max(H, min(512, (44 << 20) // (32 * 4 * W)))
    lb = 1
    for d in range(1, B + 1):
        if B % d == 0 and d * H <= max_lanes:
            lb = d
    return lb


def sor2d_pallas(f, dbc, nbc, num_iter, u0, *, h, omega):
    """Functional port of SOR2d.forward.

    dbc / nbc are accepted (and ignored) exactly like the PyTorch reference,
    whose update_DB / update_NB never read them.  The (folded) u0 buffer is
    donated to the output, matching torch's in-place update semantics.
    """
    del dbc, nbc
    B, C, W, H = f.shape
    assert C == 1 and W % 2 == 0 and H % 2 == 0 and W >= 4 and H >= 4

    lb = _choose_lane_batch(B, W, H)
    nb = B // lb
    L = lb * H

    def fold(x):   # (B, 1, W, H) -> lane-dense (nb, W, lb*H)
        x = x.reshape(nb, lb, W, H).astype(jnp.float32)
        return x.transpose(0, 2, 1, 3).reshape(nb, W, L)

    f3 = fold(f)
    u3 = fold(u0)
    omega_arr = jnp.asarray([omega], dtype=jnp.float32)   # learnable param (fixed init)

    kernel = functools.partial(_sor2d_kernel, h=float(h),
                               num_iter=int(num_iter), height=H)

    slab = W * L * 4
    vmem_bytes = int(min(48 << 20, max(32 * slab, 16 << 20)))   # v7x-safe (< 64 MiB)

    out = pl.pallas_call(
        kernel,
        out_shape=jax.ShapeDtypeStruct((nb, W, L), jnp.float32),
        grid_spec=pltpu.PrefetchScalarGridSpec(
            num_scalar_prefetch=0,
            grid=(nb,),
            in_specs=[
                pl.BlockSpec(memory_space=pltpu.MemorySpace.SMEM),   # omega
                pl.BlockSpec((None, W, L), lambda b: (b, 0, 0)),     # f  (folded)
                pl.BlockSpec((None, W, L), lambda b: (b, 0, 0)),     # u0 (folded)
            ],
            out_specs=pl.BlockSpec((None, W, L), lambda b: (b, 0, 0)),
            scratch_shapes=[pltpu.VMEM((W + 2, L), jnp.float32)],    # halo field
        ),
        input_output_aliases={2: 0},   # u is updated "in place" (torch semantics)
        compiler_params=pltpu.CompilerParams(
            dimension_semantics=("parallel",),
            vmem_limit_bytes=vmem_bytes,
        ),
    )(omega_arr, f3, u3)

    out = out.reshape(nb, W, lb, H).transpose(0, 2, 1, 3).reshape(B, C, W, H)
    return out.astype(u0.dtype)


# ---------------- NumPy reference (literal port of the PyTorch module) -------


def _ref_conv(x):
    # Conv2d, stride=2, padding=0, 3x3 cross kernel (0.25 N/S/E/W, -1 center).
    b, c, Wn, Hn = x.shape
    oW = (Wn - 3) // 2 + 1
    oH = (Hn - 3) // 2 + 1
    out = np.zeros((b, c, oW, oH), dtype=x.dtype)
    for i in range(oW):
        for j in range(oH):
            r, s = 2 * i, 2 * j
            out[:, :, i, j] = (
                0.25 * (x[:, :, r, s + 1] + x[:, :, r + 1, s]
                        + x[:, :, r + 1, s + 2] + x[:, :, r + 2, s + 1])
                - x[:, :, r + 1, s + 1]
            )
    return out


def _ref_sor2d(f, num_iter, u0, h, omega):
    u = u0.copy()
    for _ in range(num_iter):
        u[:, :, 1:-1:2, 1:-1:2] += omega * (_ref_conv(u) - h ** 2 / 4.0 * f[:, :, 1:-1:2, 1:-1:2])
        u[:, :, 1:-1:2, 2::2] += omega * (_ref_conv(u[:, :, :, 1:]) - h ** 2 / 4.0 * f[:, :, 1:-1:2, 2::2])
        u[:, :, 2::2, 1:-1:2] += omega * (_ref_conv(u[:, :, 1:, :]) - h ** 2 / 4.0 * f[:, :, 2::2, 1:-1:2])
        u[:, :, 2::2, 2::2] += omega * (_ref_conv(u[:, :, 1:, 1:]) - h ** 2 / 4.0 * f[:, :, 2::2, 2::2])
        u[:, :, :, -1] = 0.0                 # update_DB
        u[:, :, 0, :] = u[:, :, 1, :]        # update_NB (sequential)
        u[:, :, :, 0] = u[:, :, :, 1]
        u[:, :, -1, :] = u[:, :, -2, :]
    return u


if __name__ == "__main__":
    B, C, W, H = 2, 1, 16, 16
    num_iter = 3
    h = 1.0 / (W - 1)        # grid spacing (module __init__ arg)
    omega = 1.5              # relaxation factor (module __init__ arg)

    key = jax.random.PRNGKey(0)
    k1, k2 = jax.random.split(key)
    f = jax.random.normal(k1, (B, C, W, H), dtype=jnp.float32)
    u0 = jax.random.normal(k2, (B, C, W, H), dtype=jnp.float32)
    dbc = jnp.zeros((B, C, W, H), jnp.float32)   # unused by the reference math
    nbc = jnp.zeros((B, C, W, H), jnp.float32)   # unused by the reference math

    out = sor2d_pallas(f, dbc, nbc, num_iter, u0, h=h, omega=omega)
    out = jax.block_until_ready(out)

    ref = _ref_sor2d(np.asarray(f, dtype=np.float64), num_iter,
                     np.asarray(u0, dtype=np.float64), h, omega)
    np.testing.assert_allclose(np.asarray(out, dtype=np.float64), ref,
                               rtol=1e-4, atol=1e-4)
    print("KERNEL_OK")
</pallas_src>

<mosaic_0001>
module attributes {stable_mosaic.version = 11 : i64} {
  func.func @_sor2d_kernel(%arg0: i32, %arg1: memref<1xf32, #tpu.memory_space<smem>>, %arg2: memref<1x16x32xf32, #tpu.memory_space<vmem>>, %arg3: memref<1x16x32xf32, #tpu.memory_space<vmem>>, %arg4: memref<1x16x32xf32, #tpu.memory_space<vmem>>, %arg5: memref<18x32xf32, #tpu.memory_space<vmem>>) attributes {dimension_semantics = [#tpu.dimension_semantics<parallel>], iteration_bounds = array<i64: 1>, scalar_prefetch = 0 : i64, scratch_operands = 1 : i64, tpu.core_type = #tpu.core_type<tc>, window_params = [{transform_indices = @transform_0, window_bounds = array<i64: 1>}, {transform_indices = @transform_1, window_bounds = array<i64: 1, 16, 32>}, {transform_indices = @transform_2, window_bounds = array<i64: 1, 16, 32>}, {transform_indices = @transform_3, window_bounds = array<i64: 1, 16, 32>}]} {
    %c0 = arith.constant 0 : index
    %0 = memref.load %arg1[%c0] : memref<1xf32, #tpu.memory_space<smem>>
    %cst = arith.constant 2.500000e-01 : f32
    %1 = arith.mulf %0, %cst : f32
    %c0_0 = arith.constant 0 : index
    %c0_1 = arith.constant 0 : index
    %c0_2 = arith.constant 0 : index
    %2 = vector.load %arg2[%c0_0, %c0_1, %c0_2] : memref<1x16x32xf32, #tpu.memory_space<vmem>>, vector<1x16x32xf32>
    %3 = vector.shape_cast %2 : vector<1x16x32xf32> to vector<16x32xf32>
    %c0_3 = arith.constant 0 : index
    %c0_4 = arith.constant 0 : index
    %c0_5 = arith.constant 0 : index
    %4 = vector.load %arg3[%c0_3, %c0_4, %c0_5] : memref<1x16x32xf32, #tpu.memory_space<vmem>>, vector<1x16x32xf32>
    %5 = vector.shape_cast %4 : vector<1x16x32xf32> to vector<16x32xf32>
    %cst_6 = arith.constant 0.00111111114 : f32
    %6 = arith.mulf %0, %cst_6 : f32
    %7 = vector.broadcast %6 : f32 to vector<16x32xf32>
    %8 = arith.mulf %7, %3 : vector<16x32xf32>
    %9 = tpu.iota {dimensions = array<i32: 0>} : vector<16x32xi32>
    %10 = tpu.iota {dimensions = array<i32: 1>} : vector<16x16xi32>
    %11 = tpu.concatenate %10, %10 in 1 : vector<16x16xi32>, vector<16x16xi32> -> vector<16x32xi32>
    %c1_i32 = arith.constant 1 : i32
    %12 = vector.broadcast %c1_i32 : i32 to vector<16x32xi32>
    %13 = arith.andi %9, %12 : vector<16x32xi32>
    %c1_i32_7 = arith.constant 1 : i32
    %14 = vector.broadcast %c1_i32_7 : i32 to vector<16x32xi32>
    %15 = arith.cmpi eq, %13, %14 : vector<16x32xi32>
    %c15_i32 = arith.constant 15 : i32
    %16 = vector.broadcast %c15_i32 : i32 to vector<16x32xi32>
    %17 = arith.cmpi slt, %9, %16 : vector<16x32xi32>
    %18 = arith.andi %15, %17 : vector<16x32xi1>
    %c1_i32_8 = arith.constant 1 : i32
    %19 = vector.broadcast %c1_i32_8 : i32 to vector<16x32xi32>
    %20 = arith.andi %9, %19 : vector<16x32xi32>
    %c0_i32 = arith.constant 0 : i32
    %21 = vector.broadcast %c0_i32 : i32 to vector<16x32xi32>
    %22 = arith.cmpi eq, %20, %21 : vector<16x32xi32>
    %c2_i32 = arith.constant 2 : i32
    %23 = vector.broadcast %c2_i32 : i32 to vector<16x32xi32>
    %24 = arith.cmpi sge, %9, %23 : vector<16x32xi32>
    %25 = arith.andi %22, %24 : vector<16x32xi1>
    %c1_i32_9 = arith.constant 1 : i32
    %26 = vector.broadcast %c1_i32_9 : i32 to vector<16x32xi32>
    %27 = arith.andi %11, %26 : vector<16x32xi32>
    %c1_i32_10 = arith.constant 1 : i32
    %28 = vector.broadcast %c1_i32_10 : i32 to vector<16x32xi32>
    %29 = arith.cmpi eq, %27, %28 : vector<16x32xi32>
    %c15_i32_11 = arith.constant 15 : i32
    %30 = vector.broadcast %c15_i32_11 : i32 to vector<16x32xi32>
    %31 = arith.cmpi slt, %11, %30 : vector<16x32xi32>
    %32 = arith.andi %29, %31 : vector<16x32xi1>
    %c1_i32_12 = arith.constant 1 : i32
    %33 = vector.broadcast %c1_i32_12 : i32 to vector<16x32xi32>
    %34 = arith.andi %11, %33 : vector<16x32xi32>
    %c0_i32_13 = arith.constant 0 : i32
    %35 = vector.broadcast %c0_i32_13 : i32 to vector<16x32xi32>
    %36 = arith.cmpi eq, %34, %35 : vector<16x32xi32>
    %c2_i32_14 = arith.constant 2 : i32
    %37 = vector.broadcast %c2_i32_14 : i32 to vector<16x32xi32>
    %38 = arith.cmpi sge, %11, %37 : vector<16x32xi32>
    %39 = arith.andi %36, %38 : vector<16x32xi1>
    %40 = arith.andi %18, %32 : vector<16x32xi1>
    %41 = arith.andi %18, %39 : vector<16x32xi1>
    %42 = arith.andi %25, %32 : vector<16x32xi1>
    %43 = arith.andi %25, %39 : vector<16x32xi1>
    %c15_i32_15 = arith.constant 15 : i32
    %44 = vector.broadcast %c15_i32_15 : i32 to vector<16x32xi32>
    %45 = arith.cmpi eq, %11, %44 : vector<16x32xi32>
    %c0_i32_16 = arith.constant 0 : i32
    %46 = vector.broadcast %c0_i32_16 : i32 to vector<16x32xi32>
    %47 = arith.cmpi eq, %11, %46 : vector<16x32xi32>
    %c0_i32_17 = arith.constant 0 : i32
    %48 = vector.broadcast %c0_i32_17 : i32 to vector<16x32xi32>
    %49 = arith.cmpi eq, %9, %48 : vector<16x32xi32>
    %c15_i32_18 = arith.constant 15 : i32
    %50 = vector.broadcast %c15_i32_18 : i32 to vector<16x32xi32>
    %51 = arith.cmpi eq, %9, %50 : vector<16x32xi32>
    %cst_19 = arith.constant 0.000000e+00 : f32
    %52 = vector.broadcast %cst_19 : f32 to vector<1x32xf32>
    %c0_20 = arith.constant 0 : index
    %c0_21 = arith.constant 0 : index
    %53 = vector.load %arg5[%c0_20, %c0_21] : memref<18x32xf32, #tpu.memory_space<vmem>>, vector<1x32xf32>
    tpu.vector_store %arg5[%c0_20, %c0_21], %52 {strides = array<i32>} : memref<18x32xf32, #tpu.memory_space<vmem>>, vector<1x32xf32>,
    %cst_22 = arith.constant 0.000000e+00 : f32
    %54 = vector.broadcast %cst_22 : f32 to vector<1x32xf32>
    %c17 = arith.constant 17 : index
    %c0_23 = arith.constant 0 : index
    %55 = vector.load %arg5[%c17, %c0_23] : memref<18x32xf32, #tpu.memory_space<vmem>>, vector<1x32xf32>
    tpu.vector_store %arg5[%c17, %c0_23], %54 {strides = array<i32>} : memref<18x32xf32, #tpu.memory_space<vmem>>, vector<1x32xf32>,
    %cst_24 = arith.constant 0.000000e+00 : f32
    %c0_i32_25 = arith.constant 0 : i32
    %c3_i32 = arith.constant 3 : i32
    %56 = arith.addi %c0_i32_25, %c3_i32 : i32
    %c1_i32_26 = arith.constant 1 : i32
    %57 = scf.for %arg6 = %c0_i32_25 to %56 step %c1_i32_26 iter_args(%arg7 = %5) -> (vector<16x32xf32>)  : i32 {
      %c1 = arith.constant 1 : index
      %c0_30 = arith.constant 0 : index
      %61 = vector.load %arg5[%c1, %c0_30] : memref<18x32xf32, #tpu.memory_space<vmem>>, vector<16x32xf32>
      tpu.vector_store %arg5[%c1, %c0_30], %arg7 {strides = array<i32>} : memref<18x32xf32, #tpu.memory_space<vmem>>, vector<16x32xf32>,
      %c0_31 = arith.constant 0 : index
      %c0_32 = arith.constant 0 : index
      %62 = vector.load %arg5[%c0_31, %c0_32] : memref<18x32xf32, #tpu.memory_space<vmem>>, vector<16x32xf32>
      %c2 = arith.constant 2 : index
      %c0_33 = arith.constant 0 : index
      %63 = vector.load %arg5[%c2, %c0_33] : memref<18x32xf32, #tpu.memory_space<vmem>>, vector<16x32xf32>
      %c1_i32_34 = arith.constant 1 : i32
      %64 = tpu.dynamic_rotate %arg7 by %c1_i32_34 dim 1 : vector<16x32xf32>, i32 -> vector<16x32xf32>
      %c31_i32 = arith.constant 31 : i32
      %65 = tpu.dynamic_rotate %arg7 by %c31_i32 dim 1 : vector<16x32xf32>, i32 -> vector<16x32xf32>
      %66 = arith.addf %62, %63 : vector<16x32xf32>
      %67 = arith.addf %66, %64 : vector<16x32xf32>
      %68 = arith.addf %67, %65 : vector<16x32xf32>
      %69 = vector.broadcast %1 : f32 to vector<16x32xf32>
      %70 = arith.mulf %69, %68 : vector<16x32xf32>
      %71 = vector.broadcast %0 : f32 to vector<16x32xf32>
      %72 = arith.mulf %71, %arg7 : vector<16x32xf32>
      %73 = arith.subf %70, %72 : vector<16x32xf32>
      %74 = arith.subf %73, %8 : vector<16x32xf32>
      %75 = vector.broadcast %cst_24 : f32 to vector<16x32xf32>
      %76 = arith.select %40, %74, %75 : vector<16x32xi1>, vector<16x32xf32>
      %77 = arith.addf %arg7, %76 : vector<16x32xf32>
      %c1_35 = arith.constant 1 : index
      %c0_36 = arith.constant 0 : index
      %78 = vector.load %arg5[%c1_35, %c0_36] : memref<18x32xf32, #tpu.memory_space<vmem>>, vector<16x32xf32>
      tpu.vector_store %arg5[%c1_35, %c0_36], %77 {strides = array<i32>} : memref<18x32xf32, #tpu.memory_space<vmem>>, vector<16x32xf32>,
      %c0_37 = arith.constant 0 : index
      %c0_38 = arith.constant 0 : index
      %79 = vector.load %arg5[%c0_37, %c0_38] : memref<18x32xf32, #tpu.memory_space<vmem>>, vector<16x32xf32>
      %c2_39 = arith.constant 2 : index
      %c0_40 = arith.constant 0 : index
      %80 = vector.load %arg5[%c2_39, %c0_40] : memref<18x32xf32, #tpu.memory_space<vmem>>, vector<16x32xf32>
      %c1_i32_41 = arith.constant 1 : i32
      %81 = tpu.dynamic_rotate %77 by %c1_i32_41 dim 1 : vector<16x32xf32>, i32 -> vector<16x32xf32>
      %c31_i32_42 = arith.constant 31 : i32
      %82 = tpu.dynamic_rotate %77 by %c31_i32_42 dim 1 : vector<16x32xf32>, i32 -> vector<16x32xf32>
      %83 = arith.addf %79, %80 : vector<16x32xf32>
      %84 = arith.addf %83, %81 : vector<16x32xf32>
      %85 = arith.addf %84, %82 : vector<16x32xf32>
      %86 = vector.broadcast %1 : f32 to vector<16x32xf32>
      %87 = arith.mulf %86, %85 : vector<16x32xf32>
      %88 = vector.broadcast %0 : f32 to vector<16x32xf32>
      %89 = arith.mulf %88, %77 : vector<16x32xf32>
      %90 = arith.subf %87, %89 : vector<16x32xf32>
      %91 = arith.subf %90, %8 : vector<16x32xf32>
      %92 = vector.broadcast %cst_24 : f32 to vector<16x32xf32>
      %93 = arith.select %41, %91, %92 : vector<16x32xi1>, vector<16x32xf32>
      %94 = arith.addf %77, %93 : vector<16x32xf32>
      %c1_43 = arith.constant 1 : index
      %c0_44 = arith.constant 0 : index
      %95 = vector.load %arg5[%c1_43, %c0_44] : memref<18x32xf32, #tpu.memory_space<vmem>>, vector<16x32xf32>
      tpu.vector_store %arg5[%c1_43, %c0_44], %94 {strides = array<i32>} : memref<18x32xf32, #tpu.memory_space<vmem>>, vector<16x32xf32>,
      %c0_45 = arith.constant 0 : index
      %c0_46 = arith.constant 0 : index
      %96 = vector.load %arg5[%c0_45, %c0_46] : memref<18x32xf32, #tpu.memory_space<vmem>>, vector<16x32xf32>
      %c2_47 = arith.constant 2 : index
      %c0_48 = arith.constant 0 : index
      %97 = vector.load %arg5[%c2_47, %c0_48] : memref<18x32xf32, #tpu.memory_space<vmem>>, vector<16x32xf32>
      %c1_i32_49 = arith.constant 1 : i32
      %98 = tpu.dynamic_rotate %94 by %c1_i32_49 dim 1 : vector<16x32xf32>, i32 -> vector<16x32xf32>
      %c31_i32_50 = arith.constant 31 : i32
      %99 = tpu.dynamic_rotate %94 by %c31_i32_50 dim 1 : vector<16x32xf32>, i32 -> vector<16x32xf32>
      %100 = arith.addf %96, %97 : vector<16x32xf32>
      %101 = arith.addf %100, %98 : vector<16x32xf32>
      %102 = arith.addf %101, %99 : vector<16x32xf32>
      %103 = vector.broadcast %1 : f32 to vector<16x32xf32>
      %104 = arith.mulf %103, %102 : vector<16x32xf32>
      %105 = vector.broadcast %0 : f32 to vector<16x32xf32>
      %106 = arith.mulf %105, %94 : vector<16x32xf32>
      %107 = arith.subf %104, %106 : vector<16x32xf32>
      %108 = arith.subf %107, %8 : vector<16x32xf32>
      %109 = vector.broadcast %cst_24 : f32 to vector<16x32xf32>
      %110 = arith.select %42, %108, %109 : vector<16x32xi1>, vector<16x32xf32>
      %111 = arith.addf %94, %110 : vector<16x32xf32>
      %c1_51 = arith.constant 1 : index
      %c0_52 = arith.constant 0 : index
      %112 = vector.load %arg5[%c1_51, %c0_52] : memref<18x32xf32, #tpu.memory_space<vmem>>, vector<16x32xf32>
      tpu.vector_store %arg5[%c1_51, %c0_52], %111 {strides = array<i32>} : memref<18x32xf32, #tpu.memory_space<vmem>>, vector<16x32xf32>,
      %c0_53 = arith.constant 0 : index
      %c0_54 = arith.constant 0 : index
      %113 = vector.load %arg5[%c0_53, %c0_54] : memref<18x32xf32, #tpu.memory_space<vmem>>, vector<16x32xf32>
      %c2_55 = arith.constant 2 : index
      %c0_56 = arith.constant 0 : index
      %114 = vector.load %arg5[%c2_55, %c0_56] : memref<18x32xf32, #tpu.memory_space<vmem>>, vector<16x32xf32>
      %c1_i32_57 = arith.constant 1 : i32
      %115 = tpu.dynamic_rotate %111 by %c1_i32_57 dim 1 : vector<16x32xf32>, i32 -> vector<16x32xf32>
      %c31_i32_58 = arith.constant 31 : i32
      %116 = tpu.dynamic_rotate %111 by %c31_i32_58 dim 1 : vector<16x32xf32>, i32 -> vector<16x32xf32>
      %117 = arith.addf %113, %114 : vector<16x32xf32>
      %118 = arith.addf %117, %115 : vector<16x32xf32>
      %119 = arith.addf %118, %116 : vector<16x32xf32>
      %120 = vector.broadcast %1 : f32 to vector<16x32xf32>
      %121 = arith.mulf %120, %119 : vector<16x32xf32>
      %122 = vector.broadcast %0 : f32 to vector<16x32xf32>
      %123 = arith.mulf %122, %111 : vector<16x32xf32>
      %124 = arith.subf %121, %123 : vector<16x32xf32>
      %125 = arith.subf %124, %8 : vector<16x32xf32>
      %126 = vector.broadcast %cst_24 : f32 to vector<16x32xf32>
      %127 = arith.select %43, %125, %126 : vector<16x32xi1>, vector<16x32xf32>
      %128 = arith.addf %111, %127 : vector<16x32xf32>
      %129 = vector.broadcast %cst_24 : f32 to vector<16x32xf32>
      %130 = arith.select %45, %129, %128 : vector<16x32xi1>, vector<16x32xf32>
      %131 = vector.extract_strided_slice %130 {offsets = [1, 0], sizes = [1, 32], strides = [1, 1]} : vector<16x32xf32> to vector<1x32xf32>
      %132 = vector.extract_strided_slice %130 {offsets = [14, 0], sizes = [1, 32], strides = [1, 1]} : vector<16x32xf32> to vector<1x32xf32>
      %133 = vector.shape_cast %131 : vector<1x32xf32> to vector<1x32xf32>
      %134 = vector.broadcast %133 : vector<1x32xf32> to vector<16x32xf32>
      %135 = arith.select %49, %134, %130 : vector<16x32xi1>, vector<16x32xf32>
      %136 = vector.shape_cast %132 : vector<1x32xf32> to vector<1x32xf32>
      %137 = vector.broadcast %136 : vector<1x32xf32> to vector<16x32xf32>
      %138 = arith.select %51, %137, %135 : vector<16x32xi1>, vector<16x32xf32>
      %c31_i32_59 = arith.constant 31 : i32
      %139 = tpu.dynamic_rotate %138 by %c31_i32_59 dim 1 : vector<16x32xf32>, i32 -> vector<16x32xf32>
      %140 = arith.select %47, %139, %138 : vector<16x32xi1>, vector<16x32xf32>
      scf.yield %140 : vector<16x32xf32>
    }
    %c0_27 = arith.constant 0 : index
    %c0_28 = arith.constant 0 : index
    %c0_29 = arith.constant 0 : index
    %58 = vector.load %arg4[%c0_27, %c0_28, %c0_29] : memref<1x16x32xf32, #tpu.memory_space<vmem>>, vector<1x16x32xf32>
    %59 = vector.shape_cast %58 : vector<1x16x32xf32> to vector<16x32xf32>
    %60 = vector.shape_cast %57 : vector<16x32xf32> to vector<1x16x32xf32>
    tpu.vector_store %arg4[%c0_27, %c0_28, %c0_29], %60 {strides = array<i32>} : memref<1x16x32xf32, #tpu.memory_space<vmem>>, vector<1x16x32xf32>,
    return
  }
  func.func @transform_0(%arg0: i32) -> i32 {
    %c0_i32 = arith.constant 0 : i32
    %c0_i32_0 = arith.constant 0 : i32
    return %c0_i32 : i32
  }
  func.func @transform_1(%arg0: i32) -> (i32, i32, i32) {
    %c0_i32 = arith.constant 0 : i32
    %c0_i32_0 = arith.constant 0 : i32
    %c0_i32_1 = arith.constant 0 : i32
    return %arg0, %c0_i32, %c0_i32_0 : i32, i32, i32
  }
  func.func @transform_2(%arg0: i32) -> (i32, i32, i32) {
    %c0_i32 = arith.constant 0 : i32
    %c0_i32_0 = arith.constant 0 : i32
    %c0_i32_1 = arith.constant 0 : i32
    return %arg0, %c0_i32, %c0_i32_0 : i32, i32, i32
  }
  func.func @transform_3(%arg0: i32) -> (i32, i32, i32) {
    %c0_i32 = arith.constant 0 : i32
    %c0_i32_0 = arith.constant 0 : i32
    %c0_i32_1 = arith.constant 0 : i32
    return %arg0, %c0_i32, %c0_i32_0 : i32, i32, i32
  }
}

</mosaic_0001>

<llo_original>
// kernel: tpu_custom_call.1
$region0: #{tpu_custom_call.1}
  #allocation0 [shape = 'u32[]', space=smem, size = 0x4, offset = 0x4, fixed_abs, tag = 'smem constant byte address 0x4 - core index']
  #allocation1 [shape = 'u32[72,128]{1,0:T(1,128)}', space=vmem, size = 0x9000, scoped, tag = 'internal scratch']
  #allocation2 [shape = 'f32[18,32]{1,0:T(8,128)}', space=vmem, size = 0x3000, scoped, tag = 'scratch operand']
  #allocation3 [shape = 'f32[1]{0:T(128)S(6)}', space=smem, size = 0x200, scoped, tag = 'scoped memory for tpu_custom_call.1']
  %s0 = inlined_call_operand.<no memory space> [shape: f32[1], index: 0, kind: input, shape index: {}]
  %s1 = inlined_call_operand.vmem [shape: f32[1,16,32], index: 1, kind: input, shape index: {}]
  %s2 = inlined_call_operand.hbm [shape: f32[1,16,32], index: 2, kind: input, shape index: {}, may-alias: {2,3}]
  %s3 = inlined_call_operand.hbm [shape: f32[1,16,32], index: 3, kind: output, shape index: {}, may-alias: {2,3}]
  %s4 = sld [smem:[#allocation0]]
  $region33: #{tpu_custom_call.1} parent=0
    _
  %s6 = ssub.s32 1, %s4
  %s7 = scalar_select 0, %s6, %s4
  %8 = sst [smem:[#allocation3]] %s0
  $region1: #{tpu_custom_call.1} parent=0
    #allocation4 [shape = 'u8[8192]{0}', space=vmem, size = 0x2000, scoped, tag = 'input window, operand 2, single buffered']
    #allocation5 [shape = 's32[1]{0}', space=sflag, size = 0x4, scoped, tag = 'scoped memory for tpu_custom_call.1']
    #allocation6 [shape = 's32[1]{0}', space=sflag, size = 0x4, scoped, tag = 'scoped memory for tpu_custom_call.1']
    #allocation7 [shape = 'u8[8192]{0}', space=vmem, size = 0x2000, scoped, tag = 'output window, operand 0, single buffered']
    %9 = vsyncpa [#allocation5], 0
    %10 = vsyncpa [#allocation6], 0
    // Predicated region
    $region2: #{tpu_custom_call.1} parent=1 // pred_check
      _
    $region3: #{tpu_custom_call.1} parent=1 // pred_check_branch
      %12 = sbr.rel (0) target = $region5
    $region4: #{tpu_custom_call.1} parent=1 // pred_region
      _
    $region5: #{tpu_custom_call.1} parent=1 // pred_fallthru
      _
    // Predicated region
    $region6: #{tpu_custom_call.1} parent=1 // pred_check
      _
    $region7: #{tpu_custom_call.1} parent=1 // pred_check_branch
      %14 = sbr.rel (0) target = $region9
    $region8: #{tpu_custom_call.1} parent=1 // pred_region
      _
    $region9: #{tpu_custom_call.1} parent=1 // pred_fallthru
      _
    // Predicated region
    $region10: #{tpu_custom_call.1} parent=1 // pred_check
      _
    $region11: #{tpu_custom_call.1} parent=1 // pred_check_branch
      %16 = sbr.rel (0) target = $region13
    $region12: #{tpu_custom_call.1} parent=1 // pred_region
      %18 = vsyncadd [#allocation5], 0
      %s19 = sshll.u32 %s2, 4
      %s20 = int_to_ptr.hbm [resolvable:$true] %s19
      %s21 = sshll.u32 [#allocation4], 4
      %s22 = int_to_ptr.vmem [resolvable:$true] %s21
      %27 = dma.hbm_to_vmem [thread:$0]  %s20, 256, %s22, [#allocation5], 128, 128, 8
    $region13: #{tpu_custom_call.1} parent=1 // pred_fallthru
      _
    // Predicated region
    $region14: #{tpu_custom_call.1} parent=1 // pred_check
      _
    $region15: #{tpu_custom_call.1} parent=1 // pred_check_branch
      %29 = sbr.rel (0) target = $region17
    $region16: #{tpu_custom_call.1} parent=1 // pred_region
      %31 = dma.done [#allocation5], 256
    $region17: #{tpu_custom_call.1} parent=1 // pred_fallthru
      _
    %s32 = sld [smem:[#allocation3]]
    %s33 = smul.f32 %s32, 0.25
    %v34 = vld [vmem:[%s1] sm:$0xff]
    %v35 = vld [vmem:[%s1 + $0x8] sm:$0xff]
    %v36 = vld [vmem:[#allocation4] sm:$0xff]
    %v37 = vld [vmem:[#allocation4 + $0x8] sm:$0xff]
    %s38 = smul.f32 %s32, 0.0011111111
    %v39 = vstv %s38
    %v40 = vmul.f32 %v39, %v34
    %v41 = vmul.f32 %v39, %v35
    %v42 = vlaneseq
    %v43 = vshrl.u32 %v42, 7
    %v44 = vadd.s32 %v43, 8
    %v45 = vlaneseq
    %v46 = vand.u32 %v45, 127
    %47 = vrot.lane.b32.xlu0 %v46, 16
    %v48 = vpop.permute.xlu0 %47
    %vm49 = vcmask 130048
    %v50 = vsel %vm49, %v46, %v48
    %v51 = vand.u32 %v43, 1
    %v52 = vand.u32 %v44, 1
    %vm53 = vcmp.eq.s32.totalorder %v51, 1
    %vm54 = vcmp.eq.s32.totalorder %v52, 1
    %vm55 = vcmp.lt.s32.totalorder %v43, 15
    %vm56 = vcmp.lt.s32.totalorder %v44, 15
    %vm57 = vmand %vm53, %vm55
    %vm58 = vmand %vm54, %vm56
    %vm59 = vcmp.eq.s32.totalorder %v51, 0
    %vm60 = vcmp.eq.s32.totalorder %v52, 0
    %vm61 = vcmp.ge.s32.totalorder %v43, 2
    %vm62 = vcmp.ge.s32.totalorder %v44, 2
    %vm63 = vmand %vm59, %vm61
    %vm64 = vmand %vm60, %vm62
    %v65 = vand.u32 %v50, 1
    %vm66 = vcmp.eq.s32.totalorder %v65, 1
    %vm67 = vcmp.lt.s32.totalorder %v50, 15
    %vm68 = vmand %vm66, %vm67
    %vm69 = vcmp.eq.s32.totalorder %v65, 0
    %vm70 = vcmp.ge.s32.totalorder %v50, 2
    %vm71 = vmand %vm69, %vm70
    %vm72 = vmand %vm57, %vm68
    %vm73 = vmand %vm58, %vm68
    %vm74 = vmand %vm57, %vm71
    %vm75 = vmand %vm58, %vm71
    %vm76 = vmand %vm63, %vm68
    %vm77 = vmand %vm64, %vm68
    %vm78 = vmand %vm63, %vm71
    %vm79 = vmand %vm64, %vm71
    %vm80 = vcmp.eq.s32.totalorder %v50, 15
    %vm81 = vcmp.eq.s32.totalorder %v50, 0
    %vm82 = vcmp.eq.s32.totalorder %v43, 0
    %vm83 = vcmp.eq.s32.totalorder %v44, 0
    %vm84 = vcmp.eq.s32.totalorder %v43, 15
    %vm85 = vcmp.eq.s32.totalorder %v44, 15
    %vm86 = vcmask 253952
    %87 = vst.msk [vmem:[#allocation2] sm:$0x1] %vm86, 0.0
    %88 = vst.msk [vmem:[#allocation2 + $0x11] sm:$0x1] %vm86, 0.0
    loop: start=0, step=1, limit=3
    $region18: #{tpu_custom_call.1} parent=1 // loop_pre_header
      _
    $region19: #{tpu_custom_call.1} parent=1 // loop_header
      %s90 = sphi 0, %s94
      %p91 = scmp.ge.s32.totalorder %s90, 3
      %v95 = vphi %v36, %v329
      %v96 = vphi %v37, %v330
    $region20: #{tpu_custom_call.1} parent=1 // loop_header_branch
      %93 = sbr.rel (%p91) target = $region24
    $region21: #{tpu_custom_call.1} parent=1 // loop_body
      %vm97 = vcmask 261120
      %98 = vst.msk [vmem:[#allocation2 + $0x1] sm:$0xff] %vm97, %v95
      %99 = vst.msk [vmem:[#allocation2 + $0x9] sm:$0xff] %vm97, %v96
      %v100 = vld [vmem:[#allocation2] sm:$0xff]
      %v101 = vld [vmem:[#allocation2 + $0x8] sm:$0xff]
      %v102 = vld [vmem:[#allocation2 + $0x2] sm:$0xff]
      %v103 = vld [vmem:[#allocation2 + $0xa] sm:$0xff]
      %vm104 = vcmask 1047808
      %105 = vrot.lane.b32.xlu0 %v95, 32
      %v106 = vpop.permute.xlu0 %105
      %v107 = vsel %vm104, %v106, %v95
      %108 = vrot.lane.b32.xlu0 %v96, 32
      %v109 = vpop.permute.xlu0 %108
      %v110 = vsel %vm104, %v109, %v96
      %111 = vrot.lane.b32.xlu0 %v107, 32
      %v112 = vpop.permute.xlu0 %111
      %113 = vrot.lane.b32.xlu0 %v110, 32
      %v114 = vpop.permute.xlu0 %113
      %v115 = vsel %vm104, %v112, %v95
      %v116 = vsel %vm104, %v114, %v96
      %v117 = vadd.f32 %v100, %v102
      %v118 = vadd.f32 %v101, %v103
      %121 = vrot.lane.b32.xlu0 %v115, 97
      %v122 = vpop.permute.xlu0 %121
      %123 = vrot.lane.b32.xlu0 %v116, 97
      %v124 = vpop.permute.xlu0 %123
      %v127 = vadd.f32 %v117, %v122
      %v128 = vadd.f32 %v118, %v124
      %129 = vrot.lane.b32.xlu0 %v115, 127
      %v130 = vpop.permute.xlu0 %129
      %131 = vrot.lane.b32.xlu0 %v116, 127
      %v132 = vpop.permute.xlu0 %131
      %v135 = vadd.f32 %v127, %v130
      %v136 = vadd.f32 %v128, %v132
      %v137 = vstv %s33
      %v138 = vmul.f32 %v137, %v135
      %v139 = vmul.f32 %v137, %v136
      %v140 = vstv %s32
      %v141 = vmul.f32 %v140, %v95
      %v142 = vmul.f32 %v140, %v96
      %v143 = vsub.f32 %v138, %v141
      %v144 = vsub.f32 %v139, %v142
      %v145 = vsub.f32 %v143, %v40
      %v146 = vsub.f32 %v144, %v41
      %v147 = vsel %vm72, %v145, 0.0
      %v148 = vsel %vm73, %v146, 0.0
      %v149 = vadd.f32 %v95, %v147
      %v150 = vadd.f32 %v96, %v148
      %151 = vst.msk [vmem:[#allocation2 + $0x1] sm:$0xff] %vm97, %v149
      %152 = vst.msk [vmem:[#allocation2 + $0x9] sm:$0xff] %vm97, %v150
      %v153 = vld [vmem:[#allocation2] sm:$0xff]
      %v154 = vld [vmem:[#allocation2 + $0x8] sm:$0xff]
      %v155 = vld [vmem:[#allocation2 + $0x2] sm:$0xff]
      %v156 = vld [vmem:[#allocation2 + $0xa] sm:$0xff]
      %157 = vrot.lane.b32.xlu0 %v149, 32
      %v158 = vpop.permute.xlu0 %157
      %v159 = vsel %vm104, %v158, %v149
      %160 = vrot.lane.b32.xlu0 %v150, 32
      %v161 = vpop.permute.xlu0 %160
      %v162 = vsel %vm104, %v161, %v150
      %163 = vrot.lane.b32.xlu0 %v159, 32
      %v164 = vpop.permute.xlu0 %163
      %165 = vrot.lane.b32.xlu0 %v162, 32
      %v166 = vpop.permute.xlu0 %165
      %v167 = vsel %vm104, %v164, %v149
      %v168 = vsel %vm104, %v166, %v150
      %v169 = vadd.f32 %v153, %v155
      %v170 = vadd.f32 %v154, %v156
      %173 = vrot.lane.b32.xlu0 %v167, 97
      %v174 = vpop.permute.xlu0 %173
      %175 = vrot.lane.b32.xlu0 %v168, 97
      %v176 = vpop.permute.xlu0 %175
      %v179 = vadd.f32 %v169, %v174
      %v180 = vadd.f32 %v170, %v176
      %181 = vrot.lane.b32.xlu0 %v167, 127
      %v182 = vpop.permute.xlu0 %181
      %183 = vrot.lane.b32.xlu0 %v168, 127
      %v184 = vpop.permute.xlu0 %183
      %v187 = vadd.f32 %v179, %v182
      %v188 = vadd.f32 %v180, %v184
      %v189 = vmul.f32 %v137, %v187
      %v190 = vmul.f32 %v137, %v188
      %v191 = vmul.f32 %v140, %v149
      %v192 = vmul.f32 %v140, %v150
      %v193 = vsub.f32 %v189, %v191
      %v194 = vsub.f32 %v190, %v192
      %v195 = vsub.f32 %v193, %v40
      %v196 = vsub.f32 %v194, %v41
      %v197 = vsel %vm74, %v195, 0.0
      %v198 = vsel %vm75, %v196, 0.0
      %v199 = vadd.f32 %v149, %v197
      %v200 = vadd.f32 %v150, %v198
      %201 = vst.msk [vmem:[#allocation2 + $0x1] sm:$0xff] %vm97, %v199
      %202 = vst.msk [vmem:[#allocation2 + $0x9] sm:$0xff] %vm97, %v200
      %v203 = vld [vmem:[#allocation2] sm:$0xff]
      %v204 = vld [vmem:[#allocation2 + $0x8] sm:$0xff]
      %v205 = vld [vmem:[#allocation2 + $0x2] sm:$0xff]
      %v206 = vld [vmem:[#allocation2 + $0xa] sm:$0xff]
      %207 = vrot.lane.b32.xlu0 %v199, 32
      %v208 = vpop.permute.xlu0 %207
      %v209 = vsel %vm104, %v208, %v199
      %210 = vrot.lane.b32.xlu0 %v200, 32
      %v211 = vpop.permute.xlu0 %210
      %v212 = vsel %vm104, %v211, %v200
      %213 = vrot.lane.b32.xlu0 %v209, 32
      %v214 = vpop.permute.xlu0 %213
      %215 = vrot.lane.b32.xlu0 %v212, 32
      %v216 = vpop.permute.xlu0 %215
      %v217 = vsel %vm104, %v214, %v199
      %v218 = vsel %vm104, %v216, %v200
      %v219 = vadd.f32 %v203, %v205
      %v220 = vadd.f32 %v204, %v206
      %223 = vrot.lane.b32.xlu0 %v217, 97
      %v224 = vpop.permute.xlu0 %223
      %225 = vrot.lane.b32.xlu0 %v218, 97
      %v226 = vpop.permute.xlu0 %225
      %v229 = vadd.f32 %v219, %v224
      %v230 = vadd.f32 %v220, %v226
      %231 = vrot.lane.b32.xlu0 %v217, 127
      %v232 = vpop.permute.xlu0 %231
      %233 = vrot.lane.b32.xlu0 %v218, 127
      %v234 = vpop.permute.xlu0 %233
      %v237 = vadd.f32 %v229, %v232
      %v238 = vadd.f32 %v230, %v234
      %v239 = vmul.f32 %v137, %v237
      %v240 = vmul.f32 %v137, %v238
      %v241 = vmul.f32 %v140, %v199
      %v242 = vmul.f32 %v140, %v200
      %v243 = vsub.f32 %v239, %v241
      %v244 = vsub.f32 %v240, %v242
      %v245 = vsub.f32 %v243, %v40
      %v246 = vsub.f32 %v244, %v41
      %v247 = vsel %vm76, %v245, 0.0
      %v248 = vsel %vm77, %v246, 0.0
      %v249 = vadd.f32 %v199, %v247
      %v250 = vadd.f32 %v200, %v248
      %251 = vst.msk [vmem:[#allocation2 + $0x1] sm:$0xff] %vm97, %v249
      %252 = vst.msk [vmem:[#allocation2 + $0x9] sm:$0xff] %vm97, %v250
      %v253 = vld [vmem:[#allocation2] sm:$0xff]
      %v254 = vld [vmem:[#allocation2 + $0x8] sm:$0xff]
      %v255 = vld [vmem:[#allocation2 + $0x2] sm:$0xff]
      %v256 = vld [vmem:[#allocation2 + $0xa] sm:$0xff]
      %257 = vrot.lane.b32.xlu0 %v249, 32
      %v258 = vpop.permute.xlu0 %257
      %v259 = vsel %vm104, %v258, %v249
      %260 = vrot.lane.b32.xlu0 %v250, 32
      %v261 = vpop.permute.xlu0 %260
      %v262 = vsel %vm104, %v261, %v250
      %263 = vrot.lane.b32.xlu0 %v259, 32
      %v264 = vpop.permute.xlu0 %263
      %265 = vrot.lane.b32.xlu0 %v262, 32
      %v266 = vpop.permute.xlu0 %265
      %v267 = vsel %vm104, %v264, %v249
      %v268 = vsel %vm104, %v266, %v250
      %v269 = vadd.f32 %v253, %v255
      %v270 = vadd.f32 %v254, %v256
      %273 = vrot.lane.b32.xlu0 %v267, 97
      %v274 = vpop.permute.xlu0 %273
      %275 = vrot.lane.b32.xlu0 %v268, 97
      %v276 = vpop.permute.xlu0 %275
      %v279 = vadd.f32 %v269, %v274
      %v280 = vadd.f32 %v270, %v276
      %281 = vrot.lane.b32.xlu0 %v267, 127
      %v282 = vpop.permute.xlu0 %281
      %283 = vrot.lane.b32.xlu0 %v268, 127
      %v284 = vpop.permute.xlu0 %283
      %v287 = vadd.f32 %v279, %v282
      %v288 = vadd.f32 %v280, %v284
      %v289 = vmul.f32 %v137, %v287
      %v290 = vmul.f32 %v137, %v288
      %v291 = vmul.f32 %v140, %v249
      %v292 = vmul.f32 %v140, %v250
      %v293 = vsub.f32 %v289, %v291
      %v294 = vsub.f32 %v290, %v292
      %v295 = vsub.f32 %v293, %v40
      %v296 = vsub.f32 %v294, %v41
      %v297 = vsel %vm78, %v295, 0.0
      %v298 = vsel %vm79, %v296, 0.0
      %v299 = vadd.f32 %v249, %v297
      %v300 = vadd.f32 %v250, %v298
      %v301 = vsel %vm80, 0.0, %v299
      %v302 = vsel %vm80, 0.0, %v300
      %v303 = vperm.slane %v301, 1
      %v304 = vsel %vm82, %v303, %v301
      %v305 = vsel %vm83, %v303, %v302
      %v306 = vperm.slane %v302, 6
      %v307 = vsel %vm84, %v306, %v304
      %v308 = vsel %vm85, %v306, %v305
      %309 = vrot.lane.b32.xlu0 %v307, 32
      %v310 = vpop.permute.xlu0 %309
      %v311 = vsel %vm104, %v310, %v307
      %312 = vrot.lane.b32.xlu0 %v308, 32
      %v313 = vpop.permute.xlu0 %312
      %v314 = vsel %vm104, %v313, %v308
      %315 = vrot.lane.b32.xlu0 %v311, 32
      %v316 = vpop.permute.xlu0 %315
      %317 = vrot.lane.b32.xlu0 %v314, 32
      %v318 = vpop.permute.xlu0 %317
      %v319 = vsel %vm104, %v316, %v307
      %v320 = vsel %vm104, %v318, %v308
      %323 = vrot.lane.b32.xlu0 %v319, 127
      %v324 = vpop.permute.xlu0 %323
      %325 = vrot.lane.b32.xlu0 %v320, 127
      %v326 = vpop.permute.xlu0 %325
      %v329 = vsel %vm81, %v324, %v307
      %v330 = vsel %vm81, %v326, %v308
    $region22: #{tpu_custom_call.1} parent=1 // loop_footer
      %s94 = sadd.s32 1, %s90
    $region23: #{tpu_custom_call.1} parent=1 // loop_footer_branch
      %89 = sbr.rel target = $region19
    $region24: #{tpu_custom_call.1} parent=1 // loop_exit
      _
    %vm331 = vcmask 261120
    %332 = vst.msk [vmem:[#allocation7] sm:$0xff] %vm331, %v95
    %333 = vst.msk [vmem:[#allocation7 + $0x8] sm:$0xff] %vm331, %v96
    // Predicated region
    $region25: #{tpu_custom_call.1} parent=1 // pred_check
      _
    $region26: #{tpu_custom_call.1} parent=1 // pred_check_branch
      %335 = sbr.rel (0) target = $region28
    $region27: #{tpu_custom_call.1} parent=1 // pred_region
      %337 = vsyncadd [#allocation6], 0
      %s338 = sshll.u32 [#allocation7], 4
      %s339 = int_to_ptr.vmem [resolvable:$true] %s338
      %s340 = sshll.u32 %s3, 4
      %s341 = int_to_ptr.hbm [resolvable:$true] %s340
      %346 = dma.vmem_to_hbm [thread:$0]  %s339, 256, %s341, [#allocation6], 128, 128, 8
    $region28: #{tpu_custom_call.1} parent=1 // pred_fallthru
      _
    // Predicated region
    $region29: #{tpu_custom_call.1} parent=1 // pred_check
      _
    $region30: #{tpu_custom_call.1} parent=1 // pred_check_branch
      %348 = sbr.rel (0) target = $region32
    $region31: #{tpu_custom_call.1} parent=1 // pred_region
      %350 = dma.done [#allocation6], 256
    $region32: #{tpu_custom_call.1} parent=1 // pred_fallthru
      _
    %351 = vsyncpa [#allocation5], 1
    %352 = vsyncpa [#allocation6], 1

</llo_original>
